<compile_context>
chip_gen: v7x
topology: tpu7x:2x2x1
jax: 0.10.0
libtpu: 0.0.40
codegen_flags: <defaults>
</compile_context>

<pallas_src>
import functools

import jax
import jax.numpy as jnp
from jax.experimental import pallas as pl
from jax.experimental.pallas import tpu as pltpu


# ----------------------------------------------------------------------------
# Tiling helpers.
# ----------------------------------------------------------------------------
def _round_up(x, m):
    return ((x + m - 1) // m) * m


def _cdiv(a, b):
    return (a + b - 1) // b


def _sublane_pack(dtype):
    # Sub-32-bit dtypes pack along sublanes: f32 -> 8, bf16 -> 16, int8/fp8 -> 32.
    itemsize = jnp.dtype(dtype).itemsize
    return max(8, 32 // max(itemsize, 1))


def _vmem_capacity_bytes():
    try:
        return int(pltpu.get_tpu_info().vmem_capacity_bytes)
    except Exception:
        # Don't silently assume v7x: key the fallback off the device kind.
        kind = jax.devices()[0].device_kind.lower()
        if "v7" in kind:
            return 64 * 1024 * 1024
        return 128 * 1024 * 1024  # v5e / v6e (and CPU-interpret fallback)


def _choose_tiling(rows, h, dtype, *, bytes_per_row, budget_frac,
                   target_block_bytes=4 * 1024 * 1024):
    """Pick (tile_rows, vmem_limit_bytes) for a mem-bound row-tiled kernel.

    bytes_per_row:  total HBM<->VMEM bytes per row across *all* row-tiled
                    arrays of this kernel (inputs + outputs), real dtypes.
    budget_frac:    fraction of the scoped VMEM limit allowed for the
                    double-buffered DMA blocks (rest is headroom for f32
                    compute intermediates / compiler scratch).
    """
    pack = _sublane_pack(dtype)
    itemsize = jnp.dtype(dtype).itemsize
    phys = _vmem_capacity_bytes()
    # Raise the scoped limit explicitly (v5e default is only 16 MiB), keep
    # >=16 MiB headroom below physical, cap at 100 MiB.
    vmem_limit = max(32 * 1024 * 1024,
                     min(phys - 16 * 1024 * 1024, 100 * 1024 * 1024))
    # VMEM constraint: every row-tiled array is double-buffered.
    rows_vmem = int(vmem_limit * budget_frac) // (2 * bytes_per_row)
    # Byte-based cap: ~target_block_bytes per block is already on the HBM
    # roofline plateau; bigger blocks only reduce pipelining overlap.
    rows_target = target_block_bytes // (h * itemsize)
    tile = max(pack, min(rows_vmem, rows_target))
    tile = max(pack, (tile // pack) * pack)
    # Ensure >=2 grid steps when the problem is big enough, so the "parallel"
    # axis can shard across both TensorCores on v7x.
    if rows >= 2 * pack:
        tile = min(tile, _round_up(_cdiv(rows, 2), pack))
    tile = min(tile, _round_up(rows, pack))
    return tile, int(vmem_limit)


# ----------------------------------------------------------------------------
# LayerNorm kernel (matches torch: unbiased std, eps added to std, affine).
# ----------------------------------------------------------------------------
def _layernorm_kernel(x_ref, a_ref, b_ref, o_ref, *, eps):
    x = x_ref[...].astype(jnp.float32)                       # (tile, H)
    h = x.shape[-1]
    mean = jnp.mean(x, axis=-1, keepdims=True)
    diff = x - mean
    # torch.std(..., unbiased=True): divide by (H - 1)
    var = jnp.sum(diff * diff, axis=-1, keepdims=True) / (h - 1)
    std = jnp.sqrt(var)
    # EUP reciprocal instead of a VALU divide; approx=False keeps torch parity.
    inv = pl.reciprocal(std + eps, approx=False)
    y = a_ref[...] * diff * inv + b_ref[...]
    o_ref[...] = y.astype(o_ref.dtype)


def layernorm_pallas(x2d, a_2, b_2, *, eps=1e-7):
    rows, h = x2d.shape
    itemsize = jnp.dtype(x2d.dtype).itemsize
    # Row-tiled arrays: x and out -> 2 * h * itemsize bytes per row.
    tile, vmem_limit = _choose_tiling(rows, h, x2d.dtype,
                                      bytes_per_row=2 * h * itemsize,
                                      budget_frac=0.5)
    a2d = a_2.reshape(1, h).astype(jnp.float32)
    b2d = b_2.reshape(1, h).astype(jnp.float32)
    row_spec = pl.BlockSpec((tile, h), lambda i: (i, 0))
    return pl.pallas_call(
        functools.partial(_layernorm_kernel, eps=eps),
        out_shape=jax.ShapeDtypeStruct((rows, h), x2d.dtype),
        grid_spec=pltpu.PrefetchScalarGridSpec(
            num_scalar_prefetch=0,
            grid=(pl.cdiv(rows, tile),),          # ragged last block is fine: rows independent
            in_specs=[
                row_spec,
                pl.BlockSpec((1, h), lambda i: (0, 0)),   # constant index -> stays resident
                pl.BlockSpec((1, h), lambda i: (0, 0)),
            ],
            out_specs=row_spec,
        ),
        compiler_params=pltpu.CompilerParams(
            dimension_semantics=("parallel",),
            vmem_limit_bytes=vmem_limit,
        ),
    )(x2d, a2d, b2d)


# ----------------------------------------------------------------------------
# Residual + inverted-dropout kernel (training path only).
# ----------------------------------------------------------------------------
def _residual_dropout_kernel(x_ref, y_ref, bits_ref, o_ref, *, threshold, scale):
    x = x_ref[...].astype(jnp.float32)
    y = y_ref[...].astype(jnp.float32)
    bits = bits_ref[...]
    # Keep-decision is an integer compare on raw uint32 bits (no u32->f32
    # convert); the 1/(1-rate) scale is folded into a single select constant.
    # Note: rate extremely close to 1.0 clamps the threshold to 2^32-1, so an
    # element with bits == 0xFFFFFFFF is still kept (prob 2^-32) -- negligible.
    keep_scale = jnp.where(bits >= jnp.uint32(threshold),
                           jnp.float32(scale), jnp.float32(0.0))
    o_ref[...] = (x + y * keep_scale).astype(o_ref.dtype)


def residual_dropout_pallas(x2d, y2d, *, rate, seed=0):
    rows, h = x2d.shape
    itemsize = jnp.dtype(x2d.dtype).itemsize
    # Row-tiled arrays: x, y, out (dtype) + bits (uint32).
    bytes_per_row = (3 * itemsize + 4) * h
    # Pure elementwise kernel: intermediates stay vreg-resident, so a looser
    # VMEM budget fraction is safe (review: ~75% on v7x's 48 MiB scoped limit).
    tile, vmem_limit = _choose_tiling(rows, h, x2d.dtype,
                                      bytes_per_row=bytes_per_row,
                                      budget_frac=0.75)
    # Mask bits generated host-side with jax.random (portable; see header).
    bits = jax.random.bits(jax.random.PRNGKey(seed), (rows, h), dtype=jnp.uint32)
    threshold = min(int(round(rate * 4294967296.0)), 4294967295)
    scale = 1.0 / (1.0 - rate)
    row_spec = pl.BlockSpec((tile, h), lambda i: (i, 0))
    # TODO(synk): add input_output_aliases={0: 0} when the caller can donate x,
    # to drop the extra HBM allocation for the output slab.
    return pl.pallas_call(
        functools.partial(_residual_dropout_kernel,
                          threshold=threshold, scale=scale),
        out_shape=jax.ShapeDtypeStruct((rows, h), x2d.dtype),
        grid_spec=pltpu.PrefetchScalarGridSpec(
            num_scalar_prefetch=0,
            grid=(pl.cdiv(rows, tile),),
            in_specs=[row_spec, row_spec, row_spec],
            out_specs=row_spec,
        ),
        compiler_params=pltpu.CompilerParams(
            dimension_semantics=("parallel",),   # tiles independent -> both TCs on v7x
            vmem_limit_bytes=vmem_limit,
        ),
    )(x2d, y2d, bits)


# ----------------------------------------------------------------------------
# SublayerConnection forward.
# ----------------------------------------------------------------------------
def sublayer_connection(x, a_2, b_2, sublayer, *, eps=1e-7,
                        dropout_rate=0.1, training=False, seed=0):
    B, S, H = x.shape
    x2d = x.reshape(B * S, H)
    normed = layernorm_pallas(x2d, a_2, b_2, eps=eps).reshape(B, S, H)
    returned_value = sublayer(normed)          # user-provided callable -> tuple
    y = returned_value[0]
    if training and dropout_rate > 0.0:
        out = residual_dropout_pallas(x2d, y.reshape(B * S, H),
                                      rate=dropout_rate, seed=seed).reshape(B, S, H)
    else:
        # Eval / rate==0: let XLA fuse the residual add into the sublayer's
        # output fusion -- cheaper than a standalone Pallas pass.
        out = x + y
    return out, returned_value[1]


if __name__ == "__main__":
    # H = 128 keeps the output lane-dense (multiple of 128) while staying small.
    B, S, H = 2, 8, 128
    key = jax.random.PRNGKey(0)
    kx, kw, kb = jax.random.split(key, 3)

    x = jax.random.normal(kx, (B, S, H), dtype=jnp.float32)

    # LayerNorm parameters (module init: ones / zeros)
    a_2 = jnp.ones((H,), dtype=jnp.float32)
    b_2 = jnp.zeros((H,), dtype=jnp.float32)

    # Deterministic example sublayer: a linear map returning (value, aux),
    # mimicking e.g. an attention block that returns (output, attn_weights).
    W = jax.random.normal(kw, (H, H), dtype=jnp.float32) * 0.02
    bias = jax.random.normal(kb, (H,), dtype=jnp.float32) * 0.01

    def sublayer(z):
        return (z @ W + bias, jnp.mean(z, axis=-1))

    # Pure-JAX reference pieces.
    mean = jnp.mean(x, axis=-1, keepdims=True)
    std = jnp.sqrt(jnp.sum((x - mean) ** 2, axis=-1, keepdims=True) / (H - 1))
    normed_ref = a_2 * (x - mean) / (std + 1e-7) + b_2
    y_ref = normed_ref @ W + bias

    # Eval mode (dropout = identity).
    out, aux = sublayer_connection(x, a_2, b_2, sublayer,
                                   eps=1e-7, dropout_rate=0.1, training=False)
    out = jax.block_until_ready(out)
    aux = jax.block_until_ready(aux)
    assert jnp.allclose(out, x + y_ref, atol=1e-4, rtol=1e-4)
    assert jnp.allclose(aux, jnp.mean(normed_ref, axis=-1), atol=1e-4, rtol=1e-4)

    # Training mode: dropout mask is deterministic given the seed, so we can
    # check it exactly against a plain-JAX reference.
    rate, seed = 0.1, 123
    out_tr, _ = sublayer_connection(x, a_2, b_2, sublayer,
                                    eps=1e-7, dropout_rate=rate,
                                    training=True, seed=seed)
    out_tr = jax.block_until_ready(out_tr)
    bits = jax.random.bits(jax.random.PRNGKey(seed), (B * S, H),
                           dtype=jnp.uint32).reshape(B, S, H)
    threshold = min(int(round(rate * 4294967296.0)), 4294967295)
    keep = bits >= jnp.uint32(threshold)
    ref_tr = x + jnp.where(keep, y_ref / (1.0 - rate), 0.0)
    assert out_tr.shape == x.shape
    assert jnp.allclose(out_tr, ref_tr, atol=1e-4, rtol=1e-4)

    print("KERNEL_OK")
</pallas_src>

<mosaic_0001>
module attributes {stable_mosaic.version = 11 : i64} {
  func.func @_layernorm_kernel(%arg0: i32, %arg1: memref<8x128xf32, #tpu.memory_space<vmem>>, %arg2: memref<1x128xf32, #tpu.memory_space<vmem>>, %arg3: memref<1x128xf32, #tpu.memory_space<vmem>>, %arg4: memref<8x128xf32, #tpu.memory_space<vmem>>) attributes {dimension_semantics = [#tpu.dimension_semantics<parallel>], iteration_bounds = array<i64: 2>, scalar_prefetch = 0 : i64, scratch_operands = 0 : i64, tpu.core_type = #tpu.core_type<tc>, window_params = [{transform_indices = @transform_0, window_bounds = array<i64: 8, 128>}, {pipeline_mode = #tpu.pipeline_mode<synchronous>, transform_indices = @transform_1, window_bounds = array<i64: 1, 128>}, {pipeline_mode = #tpu.pipeline_mode<synchronous>, transform_indices = @transform_2, window_bounds = array<i64: 1, 128>}, {transform_indices = @transform_3, window_bounds = array<i64: 8, 128>}]} {
    %c0 = arith.constant 0 : index
    %c0_0 = arith.constant 0 : index
    %0 = vector.load %arg1[%c0, %c0_0] : memref<8x128xf32, #tpu.memory_space<vmem>>, vector<8x128xf32>
    %cst = arith.constant dense<0.000000e+00> : vector<8xf32>
    %1 = vector.multi_reduction <add>, %0, %cst [1] : vector<8x128xf32> to vector<8xf32>
    %2 = vector.shape_cast %1 : vector<8xf32> to vector<8x1xf32>
    %cst_1 = arith.constant 1.280000e+02 : f32
    %3 = vector.broadcast %cst_1 : f32 to vector<8x1xf32>
    %4 = arith.divf %2, %3 : vector<8x1xf32>
    %5 = vector.broadcast %4 : vector<8x1xf32> to vector<8x128xf32>
    %6 = arith.subf %0, %5 : vector<8x128xf32>
    %7 = arith.mulf %6, %6 : vector<8x128xf32>
    %cst_2 = arith.constant dense<0.000000e+00> : vector<8xf32>
    %8 = vector.multi_reduction <add>, %7, %cst_2 [1] : vector<8x128xf32> to vector<8xf32>
    %9 = vector.shape_cast %8 : vector<8xf32> to vector<8x1xf32>
    %cst_3 = arith.constant 1.270000e+02 : f32
    %10 = vector.broadcast %cst_3 : f32 to vector<8x1xf32>
    %11 = arith.divf %9, %10 : vector<8x1xf32>
    %12 = math.sqrt %11 : vector<8x1xf32>
    %cst_4 = arith.constant 1.000000e-07 : f32
    %13 = vector.broadcast %cst_4 : f32 to vector<8x1xf32>
    %14 = arith.addf %12, %13 : vector<8x1xf32>
    %15 = tpu.reciprocal %14 : vector<8x1xf32> -> vector<8x1xf32>
    %c0_5 = arith.constant 0 : index
    %c0_6 = arith.constant 0 : index
    %16 = vector.load %arg2[%c0_5, %c0_6] : memref<1x128xf32, #tpu.memory_space<vmem>>, vector<1x128xf32>
    %17 = vector.broadcast %16 : vector<1x128xf32> to vector<8x128xf32>
    %18 = arith.mulf %17, %6 : vector<8x128xf32>
    %19 = vector.broadcast %15 : vector<8x1xf32> to vector<8x128xf32>
    %20 = arith.mulf %18, %19 : vector<8x128xf32>
    %c0_7 = arith.constant 0 : index
    %c0_8 = arith.constant 0 : index
    %21 = vector.load %arg3[%c0_7, %c0_8] : memref<1x128xf32, #tpu.memory_space<vmem>>, vector<1x128xf32>
    %22 = vector.broadcast %21 : vector<1x128xf32> to vector<8x128xf32>
    %23 = arith.addf %20, %22 : vector<8x128xf32>
    %c0_9 = arith.constant 0 : index
    %c0_10 = arith.constant 0 : index
    %24 = vector.load %arg4[%c0_9, %c0_10] : memref<8x128xf32, #tpu.memory_space<vmem>>, vector<8x128xf32>
    tpu.vector_store %arg4[%c0_9, %c0_10], %23 {strides = array<i32>} : memref<8x128xf32, #tpu.memory_space<vmem>>, vector<8x128xf32>,
    return
  }
  func.func @transform_0(%arg0: i32) -> (i32, i32) {
    %c0_i32 = arith.constant 0 : i32
    %c0_i32_0 = arith.constant 0 : i32
    return %arg0, %c0_i32 : i32, i32
  }
  func.func @transform_1(%arg0: i32) -> (i32, i32) {
    %c0_i32 = arith.constant 0 : i32
    %c0_i32_0 = arith.constant 0 : i32
    %c0_i32_1 = arith.constant 0 : i32
    return %c0_i32, %c0_i32_0 : i32, i32
  }
  func.func @transform_2(%arg0: i32) -> (i32, i32) {
    %c0_i32 = arith.constant 0 : i32
    %c0_i32_0 = arith.constant 0 : i32
    %c0_i32_1 = arith.constant 0 : i32
    return %c0_i32, %c0_i32_0 : i32, i32
  }
  func.func @transform_3(%arg0: i32) -> (i32, i32) {
    %c0_i32 = arith.constant 0 : i32
    %c0_i32_0 = arith.constant 0 : i32
    return %arg0, %c0_i32 : i32, i32
  }
}

</mosaic_0001>

<llo_original>
// kernel: tpu_custom_call.1
$region0: #{tpu_custom_call.1}
  #allocation0 [shape = 'u32[]', space=smem, size = 0x4, offset = 0x4, fixed_abs, tag = 'smem constant byte address 0x4 - core index']
  #allocation1 [shape = 'u32[144,128]{1,0:T(1,128)}', space=vmem, size = 0x12000, scoped, tag = 'internal scratch']
  %s0 = inlined_call_operand.hbm [shape: f32[16,128], index: 0, kind: input, shape index: {}]
  %s1 = inlined_call_operand.hbm [shape: f32[1,128], index: 1, kind: input, shape index: {}]
  %s2 = inlined_call_operand.hbm [shape: f32[1,128], index: 2, kind: input, shape index: {}]
  %s3 = inlined_call_operand.hbm [shape: f32[16,128], index: 3, kind: output, shape index: {}]
  %s4 = sld [smem:[#allocation0]]
  $region57: #{tpu_custom_call.1} parent=0
    _
  %s6 = ssub.s32 1, %s4
  %s7 = scalar_select 0, %s6, %s4
  $region1: #{tpu_custom_call.1} parent=0
    #allocation2 [shape = 'u8[8192]{0}', space=vmem, size = 0x2000, scoped, tag = 'input window, operand 0']
    #allocation3 [shape = 's32[2]{0}', space=sflag, size = 0x8, scoped, tag = 'scoped memory for tpu_custom_call.1']
    #allocation4 [shape = 's32[2]{0}', space=sflag, size = 0x8, scoped, tag = 'scoped memory for tpu_custom_call.1']
    #allocation5 [shape = 'u8[512]{0}', space=vmem, size = 0x400, scoped, tag = 'input window, operand 1, single buffered']
    #allocation6 [shape = 's32[1]{0}', space=sflag, size = 0x4, scoped, tag = 'scoped memory for tpu_custom_call.1']
    #allocation7 [shape = 'u8[512]{0}', space=vmem, size = 0x400, scoped, tag = 'input window, operand 2, single buffered']
    #allocation8 [shape = 'u8[8192]{0}', space=vmem, size = 0x2000, scoped, tag = 'output window, operand 0']
    %8 = vsyncpa [#allocation3], 0
    %s9 = scalar_lea.sflag [#allocation3], 1
    %10 = vsyncpa %s9, 0
    %11 = vsyncpa [#allocation6], 0
    %12 = vsyncpa [#allocation4], 0
    %s13 = scalar_lea.sflag [#allocation4], 1
    %14 = vsyncpa %s13, 0
    loop: start=0, step=1, limit=4
    $region2: #{tpu_custom_call.1} parent=1 // loop_pre_header
      _
    $region3: #{tpu_custom_call.1} parent=1 // loop_header
      %s16 = sphi 0, %s20
      %p17 = scmp.ge.s32.totalorder %s16, 4
      %s26 = sphi 0, %s28
      %s29 = sphi 0, %s26
      %s30 = sphi 0, %s29
      %s46 = sphi 0, %s30
      %s50 = sphi 0, %s50
      %s52 = sphi 0, %s50
      %s53 = sphi 0, %s52
      %s67 = sphi 0, %s53
      %s71 = sphi 0, %s71
      %s73 = sphi 0, %s71
      %s74 = sphi 0, %s73
      %s88 = sphi 0, %s74
      %s94 = sphi 0, %s96
      %s97 = sphi 0, %s94
      %s98 = sphi 0, %s97
      %s114 = sphi 0, %s98
    $region4: #{tpu_custom_call.1} parent=1 // loop_header_branch
      %19 = sbr.rel (%p17) target = $region8
    $region5: #{tpu_custom_call.1} parent=1 // loop_body
      %s21 = ssub.s32 %s16, 1
      %s22 = ssub.s32 %s16, 2
      %s23 = sadd.s32 %s16, 1
      %s24 = ssub.s32 %s16, %s23
      %p25 = scmp.eq.s32.totalorder %s24, 0
      %s27 = sadd.s32 %s26, 1
      %s28 = scalar_select %p25, %s26, %s27
      %p31 = pneg %p25
      %p32 = scmp.eq.s32.totalorder %s16, 1
      %p33 = por %p31, %p32
      %p34 = scmp.ne.s32.totalorder %s26, %s29
      %p35 = scmp.eq.s32.totalorder %s16, 0
      %p36 = por %p34, %p35
      %p37 = scmp.ne.s32.totalorder %s26, %s29
      %p38 = scmp.eq.s32.totalorder %s21, 1
      %p39 = por %p37, %p38
      %p40 = scmp.ne.s32.totalorder %s29, %s30
      %p41 = scmp.eq.s32.totalorder %s21, 0
      %p42 = por %p40, %p41
      %p43 = scmp.ne.s32.totalorder %s29, %s30
      %p44 = scmp.eq.s32.totalorder %s22, 1
      %p45 = por %p43, %p44
      %p47 = scmp.ne.s32.totalorder %s30, %s46
      %p48 = scmp.eq.s32.totalorder %s22, 0
      %p49 = por %p47, %p48
      %s51 = sadd.s32 %s50, 1
      %p54 = scmp.eq.s32.totalorder %s16, 1
      %p55 = scmp.ne.s32.totalorder %s50, %s52
      %p56 = scmp.eq.s32.totalorder %s16, 0
      %p57 = por %p55, %p56
      %p58 = scmp.ne.s32.totalorder %s50, %s52
      %p59 = scmp.eq.s32.totalorder %s21, 1
      %p60 = por %p58, %p59
      %p61 = scmp.ne.s32.totalorder %s52, %s53
      %p62 = scmp.eq.s32.totalorder %s21, 0
      %p63 = por %p61, %p62
      %p64 = scmp.ne.s32.totalorder %s52, %s53
      %p65 = scmp.eq.s32.totalorder %s22, 1
      %p66 = por %p64, %p65
      %p68 = scmp.ne.s32.totalorder %s53, %s67
      %p69 = scmp.eq.s32.totalorder %s22, 0
      %p70 = por %p68, %p69
      %s72 = sadd.s32 %s71, 1
      %p75 = scmp.eq.s32.totalorder %s16, 1
      %p76 = scmp.ne.s32.totalorder %s71, %s73
      %p77 = scmp.eq.s32.totalorder %s16, 0
      %p78 = por %p76, %p77
      %p79 = scmp.ne.s32.totalorder %s71, %s73
      %p80 = scmp.eq.s32.totalorder %s21, 1
      %p81 = por %p79, %p80
      %p82 = scmp.ne.s32.totalorder %s73, %s74
      %p83 = scmp.eq.s32.totalorder %s21, 0
      %p84 = por %p82, %p83
      %p85 = scmp.ne.s32.totalorder %s73, %s74
      %p86 = scmp.eq.s32.totalorder %s22, 1
      %p87 = por %p85, %p86
      %p89 = scmp.ne.s32.totalorder %s74, %s88
      %p90 = scmp.eq.s32.totalorder %s22, 0
      %p91 = por %p89, %p90
      %s92 = ssub.s32 %s16, %s23
      %p93 = scmp.eq.s32.totalorder %s92, 0
      %s95 = sadd.s32 %s94, 1
      %s96 = scalar_select %p93, %s94, %s95
      %p99 = pneg %p93
      %p100 = scmp.eq.s32.totalorder %s16, 1
      %p101 = por %p99, %p100
      %p102 = scmp.ne.s32.totalorder %s94, %s97
      %p103 = scmp.eq.s32.totalorder %s16, 0
      %p104 = por %p102, %p103
      %p105 = scmp.ne.s32.totalorder %s94, %s97
      %p106 = scmp.eq.s32.totalorder %s21, 1
      %p107 = por %p105, %p106
      %p108 = scmp.ne.s32.totalorder %s97, %s98
      %p109 = scmp.eq.s32.totalorder %s21, 0
      %p110 = por %p108, %p109
      %p111 = scmp.ne.s32.totalorder %s97, %s98
      %p112 = scmp.eq.s32.totalorder %s22, 1
      %p113 = por %p111, %p112
      %p115 = scmp.ne.s32.totalorder %s98, %s114
      %p116 = scmp.eq.s32.totalorder %s22, 0
      %p117 = por %p115, %p116
      %p118 = scmp.le.s32.totalorder 1, %s16
      %p119 = scmp.lt.s32.totalorder %s16, 3
      %p120 = pnand %p118, %p119
      %p121 = pneg %p120
      // Predicated region
      $region9: #{tpu_custom_call.1} parent=5 // pred_check
        _
      $region10: #{tpu_custom_call.1} parent=5 // pred_check_branch
        %123 = sbr.rel (%p120) target = $region12
      $region11: #{tpu_custom_call.1} parent=5 // pred_region
        %s124 = ssub.s32 %s16, 1
        // Predicated region
        $region13: #{tpu_custom_call.1} parent=11 // pred_check
          %p125 = pneg %p63
        $region14: #{tpu_custom_call.1} parent=11 // pred_check_branch
          %127 = sbr.rel (%p125) target = $region16
        $region15: #{tpu_custom_call.1} parent=11 // pred_region
          %s129 = ssub.s32 16, 16
          %130 = vsyncadd [#allocation6], %s129
          %s132 = sshll.u32 [#allocation5], 4
          %s133 = int_to_ptr.vmem [resolvable:$true] %s132
          %135 = dma.hbm_to_vmem [thread:$0]  %s1, 16, %s133, [#allocation6]
        $region16: #{tpu_custom_call.1} parent=11 // pred_fallthru
          _
        // Predicated region
        $region17: #{tpu_custom_call.1} parent=11 // pred_check
          %p136 = pneg %p84
        $region18: #{tpu_custom_call.1} parent=11 // pred_check_branch
          %138 = sbr.rel (%p136) target = $region20
        $region19: #{tpu_custom_call.1} parent=11 // pred_region
          %s140 = ssub.s32 16, 16
          %141 = vsyncadd [#allocation6], %s140
          %s143 = sshll.u32 [#allocation7], 4
          %s144 = int_to_ptr.vmem [resolvable:$true] %s143
          %146 = dma.hbm_to_vmem [thread:$0]  %s2, 16, %s144, [#allocation6]
        $region20: #{tpu_custom_call.1} parent=11 // pred_fallthru
          _
      $region12: #{tpu_custom_call.1} parent=5 // pred_fallthru
        _
      %p147 = scmp.lt.s32.totalorder %s16, 2
      // Predicated region
      $region21: #{tpu_custom_call.1} parent=5 // pred_check
        %p148 = pneg %p147
      $region22: #{tpu_custom_call.1} parent=5 // pred_check_branch
        %150 = sbr.rel (%p148) target = $region24
      $region23: #{tpu_custom_call.1} parent=5 // pred_region
        // Predicated region
        $region25: #{tpu_custom_call.1} parent=23 // pred_check
          %p151 = pneg %p36
        $region26: #{tpu_custom_call.1} parent=23 // pred_check_branch
          %153 = sbr.rel (%p151) target = $region28
        $region27: #{tpu_custom_call.1} parent=23 // pred_region
          %s154 = sand.u32 %s26, 1
          %s155 = scalar_lea.sflag [#allocation3], %s154
          %s156 = sand.u32 %s26, 1
          %s157 = smul.addr %s156, 8
          %s158 = scalar_lea.vmem [#allocation2], %s157
          %s160 = ssub.s32 128, 128
          %161 = vsyncadd %s155, %s160
          %s162 = smul.addr %s16, 128
          %s163 = scalar_lea.hbm %s0, %s162
          %s165 = sshll.u32 %s158, 4
          %s166 = int_to_ptr.vmem [resolvable:$true] %s165
          %168 = dma.hbm_to_vmem [thread:$0]  %s163, 128, %s166, %s155
        $region28: #{tpu_custom_call.1} parent=23 // pred_fallthru
          _
      $region24: #{tpu_custom_call.1} parent=5 // pred_fallthru
        _
      %p169 = scmp.le.s32.totalorder 1, %s16
      %p170 = scmp.lt.s32.totalorder %s16, 3
      %p171 = pnand %p169, %p170
      %p172 = pneg %p171
      // Predicated region
      $region29: #{tpu_custom_call.1} parent=5 // pred_check
        _
      $region30: #{tpu_custom_call.1} parent=5 // pred_check_branch
        %174 = sbr.rel (%p171) target = $region32
      $region31: #{tpu_custom_call.1} parent=5 // pred_region
        %s175 = ssub.s32 %s16, 1
        %s176 = sand.u32 %s29, 1
        %s177 = scalar_lea.sflag [#allocation3], %s176
        %s178 = sand.u32 %s29, 1
        %s179 = smul.addr %s178, 8
        %s180 = scalar_lea.vmem [#allocation2], %s179
        // Predicated region
        $region33: #{tpu_custom_call.1} parent=31 // pred_check
          %p181 = pneg %p42
        $region34: #{tpu_custom_call.1} parent=31 // pred_check_branch
          %183 = sbr.rel (%p181) target = $region36
        $region35: #{tpu_custom_call.1} parent=31 // pred_region
          %184 = dma.done %s177, 128
        $region36: #{tpu_custom_call.1} parent=31 // pred_fallthru
          _
        // Predicated region
        $region37: #{tpu_custom_call.1} parent=31 // pred_check
          %p185 = pneg %p63
        $region38: #{tpu_custom_call.1} parent=31 // pred_check_branch
          %187 = sbr.rel (%p185) target = $region40
        $region39: #{tpu_custom_call.1} parent=31 // pred_region
          %188 = dma.done [#allocation6], 16
        $region40: #{tpu_custom_call.1} parent=31 // pred_fallthru
          _
        // Predicated region
        $region41: #{tpu_custom_call.1} parent=31 // pred_check
          %p189 = pneg %p84
        $region42: #{tpu_custom_call.1} parent=31 // pred_check_branch
          %191 = sbr.rel (%p189) target = $region44
        $region43: #{tpu_custom_call.1} parent=31 // pred_region
          %192 = dma.done [#allocation6], 16
        $region44: #{tpu_custom_call.1} parent=31 // pred_fallthru
          _
        %s193 = sand.u32 %s29, 1
        %s194 = scalar_lea.sflag [#allocation3], %s193
        %s195 = sand.u32 %s29, 1
        %s196 = smul.addr %s195, 8
        %s197 = scalar_lea.vmem [#allocation2], %s196
        %p198 = pneg %p42
        %p199 = pneg %p39
        %p200 = pneg %p63
        %p201 = pneg %p60
        %p202 = pneg %p84
        %p203 = pneg %p81
        %p204 = pneg %p110
        %p205 = pneg %p107
        %s206 = sand.u32 %s97, 1
        %s207 = scalar_lea.sflag [#allocation4], %s206
        %s208 = sand.u32 %s97, 1
        %s209 = smul.addr %s208, 8
        %s210 = scalar_lea.vmem [#allocation8], %s209
        %v211 = vld [vmem:[%s180] sm:$0xff]
        %212 = vadd.xlane.f32.xlu0 %v211
        %v213 = vpop.xlane.xlu0 %212
        %v214 = vrcp.pop 128.0
        %v215 = vmul.f32 %v213, %v214
        %v216 = vsub.f32 %v211, %v215
        %v217 = vmul.f32 %v216, %v216
        %218 = vadd.xlane.f32.xlu0 %v217
        %v219 = vpop.xlane.xlu0 %218
        %v220 = vrcp.pop 127.0
        %v221 = vmul.f32 %v219, %v220
        %v222 = vrsqrt.pop %v221
        %v223 = vmul.f32 %v221, %v222
        %vm224 = vcmp.eq.f32.partialorder %v221, inf
        %v225 = vsel %vm224, %v221, %v223
        %vm226 = vcmp.eq.f32.partialorder %v221, 0.0
        %v227 = vand.u32 %v221, 2147483648
        %v228 = vsel %vm226, %v227, %v225
        %v229 = vadd.f32 %v228, 1e-07
        %v230 = vrcp.pop %v229
        %v231 = vld [vmem:[#allocation5] sm:$0x1]
        %v233 = vlaneseq
        %v234 = vshrl.u32 %v233, 7
        %v235 = vsub.s32 0, %v234
        %v236 = vrot.slane %v231, %v235
        %v238 = vmul.f32 %v236, %v216
        %v239 = vmul.f32 %v238, %v230
        %v240 = vld [vmem:[#allocation7] sm:$0x1]
        %v242 = vlaneseq
        %v243 = vshrl.u32 %v242, 7
        %v244 = vsub.s32 0, %v243
        %v245 = vrot.slane %v240, %v244
        %v247 = vadd.f32 %v239, %v245
        %248 = vst [vmem:[%s210] sm:$0xff] %v247
        %s249 = sand.u32 %s97, 1
        %s250 = scalar_lea.sflag [#allocation4], %s249
        %s251 = sand.u32 %s97, 1
        %s252 = smul.addr %s251, 8
        %s253 = scalar_lea.vmem [#allocation8], %s252
        // Predicated region
        $region45: #{tpu_custom_call.1} parent=31 // pred_check
          %p254 = pneg %p107
        $region46: #{tpu_custom_call.1} parent=31 // pred_check_branch
          %256 = sbr.rel (%p254) target = $region48
        $region47: #{tpu_custom_call.1} parent=31 // pred_region
          %s258 = ssub.s32 128, 128
          %259 = vsyncadd %s250, %s258
          %s260 = smul.addr %s21, 128
          %s261 = scalar_lea.hbm %s3, %s260
          %s263 = sshll.u32 %s253, 4
          %s264 = int_to_ptr.vmem [resolvable:$true] %s263
          %266 = dma.vmem_to_hbm [thread:$0]  %s264, 128, %s261, %s250
        $region48: #{tpu_custom_call.1} parent=31 // pred_fallthru
          _
      $region32: #{tpu_custom_call.1} parent=5 // pred_fallthru
        _
      %p267 = scmp.le.s32.totalorder 2, %s16
      // Predicated region
      $region49: #{tpu_custom_call.1} parent=5 // pred_check
        %p268 = pneg %p267
      $region50: #{tpu_custom_call.1} parent=5 // pred_check_branch
        %270 = sbr.rel (%p268) target = $region52
      $region51: #{tpu_custom_call.1} parent=5 // pred_region
        %s271 = ssub.s32 %s16, 2
        // Predicated region
        $region53: #{tpu_custom_call.1} parent=51 // pred_check
          %p272 = pneg %p113
        $region54: #{tpu_custom_call.1} parent=51 // pred_check_branch
          %274 = sbr.rel (%p272) target = $region56
        $region55: #{tpu_custom_call.1} parent=51 // pred_region
          %s275 = sand.u32 %s98, 1
          %s276 = scalar_lea.sflag [#allocation4], %s275
          %s277 = sand.u32 %s98, 1
          %s278 = smul.addr %s277, 8
          %s279 = scalar_lea.vmem [#allocation8], %s278
          %280 = dma.done %s276, 128
        $region56: #{tpu_custom_call.1} parent=51 // pred_fallthru
          _
      $region52: #{tpu_custom_call.1} parent=5 // pred_fallthru
        _
    $region6: #{tpu_custom_call.1} parent=1 // loop_footer
      %s20 = sadd.s32 1, %s16
    $region7: #{tpu_custom_call.1} parent=1 // loop_footer_branch
      %15 = sbr.rel target = $region3
    $region8: #{tpu_custom_call.1} parent=1 // loop_exit
      _
    %281 = vsyncpa [#allocation3], 1
    %s282 = scalar_lea.sflag [#allocation3], 1
    %283 = vsyncpa %s282, 1
    %284 = vsyncpa [#allocation6], 1
    %285 = vsyncpa [#allocation4], 1
    %s286 = scalar_lea.sflag [#allocation4], 1
    %287 = vsyncpa %s286, 1

</llo_original>
